<compile_context>
chip_gen: v7x
topology: tpu7x:2x2x1
jax: 0.10.0
libtpu: 0.0.40
codegen_flags: <defaults>
</compile_context>

<pallas_src>
import numpy as np
import jax
import jax.numpy as jnp
from jax.experimental import pallas as pl
from jax.experimental.pallas import tpu as pltpu


def _homeostasis_kernel(last_ref, prev_ref, out_ref):
    """last_ref/prev_ref/out_ref: (block_rows, lanes) VMEM tiles.

    Zero out elements that spiked (==1) on both of the final two time steps;
    pass everything else through.
    """
    last = last_ref[...]
    cont = jnp.logical_and(last == 1, prev_ref[...] == 1)
    out_ref[...] = jnp.where(cont, jnp.zeros_like(last), last)


def _cdiv(a, b):
    return -(-a // b)


def homeostasis_dropout(spk_rec):
    """JAX wrapper matching HomeostasisDropout.forward (returns last step)."""
    T = spk_rec.shape[0]
    out_dims = spk_rec.shape[1:]
    N = int(np.prod(out_dims))
    dtype = spk_rec.dtype

    if T == 1:
        # continuous-spike mask is empty -> drop mask all zeros -> identity.
        return spk_rec[0]

    # ---- lane-dense 2D layout (rows, lanes), lanes a multiple of 128 ----
    lanes = next((c for c in (1024, 512, 256, 128) if N % c == 0), None)

    if lanes is not None:
        # Contiguous reshape is free; the kernel only ever DMAs the last two
        # time slabs out of this view.
        rows = N // lanes
        x3d = spk_rec.reshape(T, rows, lanes)
        t_last, t_prev = T - 1, T - 2
        trailing = 0
    else:
        # Ragged feature count: slice + pad only the two slabs we need
        # (2*N elements); the full (T, N) tensor is never copied.
        lanes = 128
        rows = _cdiv(N, lanes)
        trailing = rows * lanes - N
        pair = spk_rec.reshape(T, N)[T - 2:T]
        pair = jnp.pad(pair, ((0, 0), (0, trailing)))
        x3d = pair.reshape(2, rows, lanes)
        t_last, t_prev = 1, 0

    # ~1 MiB f32 per buffer; (2 in + 1 out) double-buffered stays well inside
    # the scoped-VMEM default on every generation.
    target_rows = (256 * 1024) // lanes          # multiple of 8 for lanes<=1024
    block_rows = rows if rows <= target_rows else target_rows
    num_blocks = _cdiv(rows, block_rows)

    out2d = pl.pallas_call(
        _homeostasis_kernel,
        out_shape=jax.ShapeDtypeStruct((rows, lanes), dtype),
        grid=(num_blocks,),
        in_specs=[
            # Same array passed twice; index_maps pin the (squeezed) time dim.
            pl.BlockSpec((None, block_rows, lanes), lambda i: (t_last, i, 0)),
            pl.BlockSpec((None, block_rows, lanes), lambda i: (t_prev, i, 0)),
        ],
        out_specs=pl.BlockSpec((block_rows, lanes), lambda i: (i, 0)),
        compiler_params=pltpu.CompilerParams(
            dimension_semantics=("parallel",),
        ),
    )(x3d, x3d)

    if trailing:
        out = out2d.reshape(rows * lanes)[:N]
    else:
        out = out2d
    return out.reshape(out_dims)


def homeostasis_dropout_ref(spk_rec):
    """Pure-JAX reference mirroring the PyTorch code line-by-line."""
    continuous = jnp.logical_and(spk_rec[1:] == 1, spk_rec[:-1] == 1)
    zeros = jnp.zeros((1,) + spk_rec.shape[1:], dtype=spk_rec.dtype)
    drop_mask = jnp.concatenate(
        [zeros, continuous.astype(spk_rec.dtype)], axis=0
    )
    masked = spk_rec * (1 - drop_mask)
    return masked[-1]


if __name__ == "__main__":
    key = jax.random.PRNGKey(0)
    # (num_steps, batch, *feature_dims) cases covering the zero-copy path,
    # the ragged/padded path, a wider slab, and the T == 1 degenerate case.
    cases = [
        (8, 2, (32, 32)),    # N % 128 == 0 -> zero-copy reshape path
        (5, 2, (100,)),      # ragged feature count -> padded fallback
        (4, 2, (16, 512)),   # wider lane-dense slab
        (1, 2, (32,)),       # single time step -> identity
    ]
    for idx, (T, B, feat) in enumerate(cases):
        k = jax.random.fold_in(key, idx)
        spk_rec = jax.random.bernoulli(
            k, p=0.6, shape=(T, B) + feat
        ).astype(jnp.float32)

        out = jax.block_until_ready(homeostasis_dropout(spk_rec))
        ref = homeostasis_dropout_ref(spk_rec)
        np.testing.assert_allclose(
            np.asarray(out), np.asarray(ref), rtol=0, atol=0
        )

    print("KERNEL_OK")
</pallas_src>

<mosaic_0001>
module attributes {stable_mosaic.version = 11 : i64} {
  func.func @_homeostasis_kernel(%arg0: i32, %arg1: memref<1x2x1024xf32, #tpu.memory_space<vmem>>, %arg2: memref<1x2x1024xf32, #tpu.memory_space<vmem>>, %arg3: memref<2x1024xf32, #tpu.memory_space<vmem>>) attributes {dimension_semantics = [#tpu.dimension_semantics<parallel>], iteration_bounds = array<i64: 1>, scalar_prefetch = 0 : i64, scratch_operands = 0 : i64, tpu.core_type = #tpu.core_type<tc>, window_params = [{transform_indices = @transform_0, window_bounds = array<i64: 1, 2, 1024>}, {transform_indices = @transform_1, window_bounds = array<i64: 1, 2, 1024>}, {transform_indices = @transform_2, window_bounds = array<i64: 2, 1024>}]} {
    %c0 = arith.constant 0 : index
    %c0_0 = arith.constant 0 : index
    %c0_1 = arith.constant 0 : index
    %0 = vector.load %arg1[%c0, %c0_0, %c0_1] : memref<1x2x1024xf32, #tpu.memory_space<vmem>>, vector<1x2x1024xf32>
    %1 = vector.shape_cast %0 : vector<1x2x1024xf32> to vector<2x1024xf32>
    %cst = arith.constant 1.000000e+00 : f32
    %2 = vector.broadcast %cst : f32 to vector<2x1024xf32>
    %3 = arith.cmpf oeq, %1, %2 : vector<2x1024xf32>
    %c0_2 = arith.constant 0 : index
    %c0_3 = arith.constant 0 : index
    %c0_4 = arith.constant 0 : index
    %4 = vector.load %arg2[%c0_2, %c0_3, %c0_4] : memref<1x2x1024xf32, #tpu.memory_space<vmem>>, vector<1x2x1024xf32>
    %5 = vector.shape_cast %4 : vector<1x2x1024xf32> to vector<2x1024xf32>
    %cst_5 = arith.constant 1.000000e+00 : f32
    %6 = vector.broadcast %cst_5 : f32 to vector<2x1024xf32>
    %7 = arith.cmpf oeq, %5, %6 : vector<2x1024xf32>
    %8 = arith.andi %3, %7 : vector<2x1024xi1>
    %cst_6 = arith.constant 0.000000e+00 : f32
    %9 = vector.broadcast %cst_6 : f32 to vector<2x1024xf32>
    %10 = arith.select %8, %9, %1 : vector<2x1024xi1>, vector<2x1024xf32>
    %c0_7 = arith.constant 0 : index
    %c0_8 = arith.constant 0 : index
    %11 = vector.load %arg3[%c0_7, %c0_8] : memref<2x1024xf32, #tpu.memory_space<vmem>>, vector<2x1024xf32>
    tpu.vector_store %arg3[%c0_7, %c0_8], %10 {strides = array<i32>} : memref<2x1024xf32, #tpu.memory_space<vmem>>, vector<2x1024xf32>,
    return
  }
  func.func @transform_0(%arg0: i32) -> (i32, i32, i32) {
    %c7_i32 = arith.constant 7 : i32
    %c0_i32 = arith.constant 0 : i32
    %c0_i32_0 = arith.constant 0 : i32
    return %c7_i32, %arg0, %c0_i32 : i32, i32, i32
  }
  func.func @transform_1(%arg0: i32) -> (i32, i32, i32) {
    %c6_i32 = arith.constant 6 : i32
    %c0_i32 = arith.constant 0 : i32
    %c0_i32_0 = arith.constant 0 : i32
    return %c6_i32, %arg0, %c0_i32 : i32, i32, i32
  }
  func.func @transform_2(%arg0: i32) -> (i32, i32) {
    %c0_i32 = arith.constant 0 : i32
    %c0_i32_0 = arith.constant 0 : i32
    return %arg0, %c0_i32 : i32, i32
  }
}

</mosaic_0001>

<llo_original>
// kernel: tpu_custom_call.1
$region0: #{tpu_custom_call.1}
  #allocation0 [shape = 'u32[]', space=smem, size = 0x4, offset = 0x4, fixed_abs, tag = 'smem constant byte address 0x4 - core index']
  #allocation1 [shape = 'u32[144,128]{1,0:T(1,128)}', space=vmem, size = 0x12000, scoped, tag = 'internal scratch']
  %s0 = inlined_call_operand.hbm [shape: f32[8,2,1024], index: 0, kind: input, shape index: {}]
  %s1 = inlined_call_operand.hbm [shape: f32[8,2,1024], index: 1, kind: input, shape index: {}]
  %s2 = inlined_call_operand.hbm [shape: f32[2,1024], index: 2, kind: output, shape index: {}]
  %s3 = sld [smem:[#allocation0]]
  $region26: #{tpu_custom_call.1} parent=0
    _
  %s5 = ssub.s32 1, %s3
  %s6 = scalar_select 0, %s5, %s3
  $region1: #{tpu_custom_call.1} parent=0
    #allocation2 [shape = 'u8[8192]{0}', space=vmem, size = 0x2000, scoped, tag = 'input window, operand 0, single buffered']
    #allocation3 [shape = 's32[1]{0}', space=sflag, size = 0x4, scoped, tag = 'scoped memory for tpu_custom_call.1']
    #allocation4 [shape = 's32[1]{0}', space=sflag, size = 0x4, scoped, tag = 'scoped memory for tpu_custom_call.1']
    #allocation5 [shape = 'u8[8192]{0}', space=vmem, size = 0x2000, scoped, tag = 'input window, operand 1, single buffered']
    #allocation6 [shape = 's32[1]{0}', space=sflag, size = 0x4, scoped, tag = 'scoped memory for tpu_custom_call.1']
    #allocation7 [shape = 'u8[8192]{0}', space=vmem, size = 0x2000, scoped, tag = 'output window, operand 0, single buffered']
    %7 = vsyncpa [#allocation3], 0
    %8 = vsyncpa [#allocation6], 0
    %9 = vsyncpa [#allocation4], 0
    // Predicated region
    $region2: #{tpu_custom_call.1} parent=1 // pred_check
      _
    $region3: #{tpu_custom_call.1} parent=1 // pred_check_branch
      %11 = sbr.rel (0) target = $region5
    $region4: #{tpu_custom_call.1} parent=1 // pred_region
      %s13 = ssub.s32 256, 256
      %14 = vsyncadd [#allocation3], %s13
      %s15 = scalar_lea.hbm %s0, 1792
      %s17 = sshll.u32 [#allocation2], 4
      %s18 = int_to_ptr.vmem [resolvable:$true] %s17
      %20 = dma.hbm_to_vmem [thread:$0]  %s15, 256, %s18, [#allocation3]
    $region5: #{tpu_custom_call.1} parent=1 // pred_fallthru
      _
    // Predicated region
    $region6: #{tpu_custom_call.1} parent=1 // pred_check
      _
    $region7: #{tpu_custom_call.1} parent=1 // pred_check_branch
      %22 = sbr.rel (0) target = $region9
    $region8: #{tpu_custom_call.1} parent=1 // pred_region
      %s24 = ssub.s32 256, 256
      %25 = vsyncadd [#allocation6], %s24
      %s26 = scalar_lea.hbm %s1, 1536
      %s28 = sshll.u32 [#allocation5], 4
      %s29 = int_to_ptr.vmem [resolvable:$true] %s28
      %31 = dma.hbm_to_vmem [thread:$0]  %s26, 256, %s29, [#allocation6]
    $region9: #{tpu_custom_call.1} parent=1 // pred_fallthru
      _
    // Predicated region
    $region10: #{tpu_custom_call.1} parent=1 // pred_check
      _
    $region11: #{tpu_custom_call.1} parent=1 // pred_check_branch
      %33 = sbr.rel (0) target = $region13
    $region12: #{tpu_custom_call.1} parent=1 // pred_region
      %34 = dma.done [#allocation3], 256
    $region13: #{tpu_custom_call.1} parent=1 // pred_fallthru
      _
    // Predicated region
    $region14: #{tpu_custom_call.1} parent=1 // pred_check
      _
    $region15: #{tpu_custom_call.1} parent=1 // pred_check_branch
      %36 = sbr.rel (0) target = $region17
    $region16: #{tpu_custom_call.1} parent=1 // pred_region
      %37 = dma.done [#allocation6], 256
    $region17: #{tpu_custom_call.1} parent=1 // pred_fallthru
      _
    %v38 = vld [vmem:[#allocation2] sm:$0xff]
    %v39 = vld [vmem:[#allocation2 + $0x8] sm:$0xff]
    %vm40 = vcmp.eq.f32.partialorder %v38, 1.0
    %vm41 = vcmp.eq.f32.partialorder %v39, 1.0
    %v42 = vld [vmem:[#allocation5] sm:$0xff]
    %v43 = vld [vmem:[#allocation5 + $0x8] sm:$0xff]
    %vm44 = vcmp.eq.f32.partialorder %v42, 1.0
    %vm45 = vcmp.eq.f32.partialorder %v43, 1.0
    %vm46 = vmand %vm40, %vm44
    %vm47 = vmand %vm41, %vm45
    %v48 = vsel %vm46, 0.0, %v38
    %v49 = vsel %vm47, 0.0, %v39
    %50 = vst [vmem:[#allocation7] sm:$0xff] %v48
    %51 = vst [vmem:[#allocation7 + $0x8] sm:$0xff] %v49
    // Predicated region
    $region18: #{tpu_custom_call.1} parent=1 // pred_check
      _
    $region19: #{tpu_custom_call.1} parent=1 // pred_check_branch
      %53 = sbr.rel (0) target = $region21
    $region20: #{tpu_custom_call.1} parent=1 // pred_region
      %s55 = ssub.s32 256, 256
      %56 = vsyncadd [#allocation4], %s55
      %s58 = sshll.u32 [#allocation7], 4
      %s59 = int_to_ptr.vmem [resolvable:$true] %s58
      %61 = dma.vmem_to_hbm [thread:$0]  %s59, 256, %s2, [#allocation4]
    $region21: #{tpu_custom_call.1} parent=1 // pred_fallthru
      _
    // Predicated region
    $region22: #{tpu_custom_call.1} parent=1 // pred_check
      _
    $region23: #{tpu_custom_call.1} parent=1 // pred_check_branch
      %63 = sbr.rel (0) target = $region25
    $region24: #{tpu_custom_call.1} parent=1 // pred_region
      %64 = dma.done [#allocation4], 256
    $region25: #{tpu_custom_call.1} parent=1 // pred_fallthru
      _
    %65 = vsyncpa [#allocation3], 1
    %66 = vsyncpa [#allocation6], 1
    %67 = vsyncpa [#allocation4], 1

</llo_original>
